<compile_context>
chip_gen: v7x
topology: tpu7x:2x2x1
jax: 0.10.0
libtpu: 0.0.40
codegen_flags: <defaults>
</compile_context>

<pallas_src>
import math
import functools

import jax
import jax.numpy as jnp
from jax.experimental import pallas as pl
from jax.experimental.pallas import tpu as pltpu


def _round_up(x, m):
    return (x + m - 1) // m * m


def _biaffine_kernel(f_ref, t_ref, uw_ref, ub_ref, out_ref, *,
                     out_size, te_pad, add_from_bias, fuse_first_mm):
    # f_ref  : (1, t_lf, from_size)        from-tensor tile
    # t_ref  : (1, te_pad, t_lt)           pre-transposed `to` tile (bias row baked in)
    # uw_ref : (from_size, out*te_pad)     weight, heads concatenated lane-dense
    # ub_ref : (1, out*te_pad)             from-bias row of U (zeros if unused), f32
    # out_ref: (1, out, t_lf, t_lt)
    f = f_ref[0]                           # (t_lf, from_size)
    t = t_ref[0]                           # (te_pad, t_lt)  -- K x N, N lane-dense

    if fuse_first_mm:
        # One fused first matmul across all heads (lane-dense N = out*te_pad).
        a = jnp.dot(f, uw_ref[...], preferred_element_type=jnp.float32)
        if add_from_bias:
            a = a + ub_ref[...]            # broadcast bias row over Lf rows
        a = a.astype(t.dtype)              # mixed-precision downcast (no-op for f32)
        for o in range(out_size):
            a_o = a[:, o * te_pad:(o + 1) * te_pad]        # lane-aligned head slice
            s = jnp.dot(a_o, t, preferred_element_type=jnp.float32)
            out_ref[0, o] = s.astype(out_ref.dtype)
    else:
        # Per-head first matmul: keeps the live f32 intermediate at t_lf*te_pad
        # (N=te_pad is still lane-full) - used when out_size*te_pad is large.
        for o in range(out_size):
            a_o = jnp.dot(f, uw_ref[:, o * te_pad:(o + 1) * te_pad],
                          preferred_element_type=jnp.float32)
            if add_from_bias:
                a_o = a_o + ub_ref[:, o * te_pad:(o + 1) * te_pad]
            a_o = a_o.astype(t.dtype)
            s = jnp.dot(a_o, t, preferred_element_type=jnp.float32)
            out_ref[0, o] = s.astype(out_ref.dtype)


def _vmem_footprint(t_lf, t_lt, *, from_size, out_size, te_pad, itemsize, fuse):
    in_from = t_lf * from_size * itemsize
    in_to = te_pad * t_lt * itemsize
    out_blk = out_size * t_lf * t_lt * itemsize
    weights = from_size * out_size * te_pad * itemsize + out_size * te_pad * 4
    a_scratch = (out_size if fuse else 1) * t_lf * te_pad * 4
    # double-buffered pipelined operands + weights + f32 intermediate + slack
    return 2 * (in_from + in_to + out_blk) + 2 * weights + a_scratch + (2 << 20)


def multi_head_biaffine(from_tensor, to_tensor, U, *, from_size, to_size,
                        out_size, bias=(True, True), native_layout=False):
    """Pallas implementation of MultiHeadBiaffine.forward.

    from_tensor: (B, Lf, from_size)
    to_tensor:   (B, Lt, to_size)
    U:           (from_size + b0, out_size * (to_size + b1))
    returns:     (B, Lf, Lt, out_size)       if native_layout=False (PyTorch layout)
                 (B, out_size, Lf, Lt)       if native_layout=True  (kernel-native, no relayout pass)
    """
    B, Lf, Fs = from_tensor.shape
    _, Lt, Ts = to_tensor.shape
    assert Fs == from_size and Ts == to_size

    b0, b1 = int(bias[0]), int(bias[1])
    Fe = from_size + b0
    Te = to_size + b1
    assert U.shape == (Fe, out_size * Te), U.shape

    dtype = from_tensor.dtype
    itemsize = jnp.dtype(dtype).itemsize
    sub = {4: 8, 2: 16, 1: 32}.get(itemsize, 8)      # sublane multiple per dtype

    # ---- VMEM-budget-derived tiling ----------------------------------------
    vmem_cap = 64 << 20                               # conservative default (v7x)
    try:
        info = pltpu.get_tpu_info()
        vmem_cap = int(getattr(info, "vmem_capacity_bytes", vmem_cap))
    except Exception:
        pass
    vmem_limit = min(int(vmem_cap * 0.75), 96 << 20)  # 96 MiB on 128 MiB parts, 48 MiB on v7x
    budget = vmem_limit - (4 << 20)

    te_pad = _round_up(Te, 128)                       # per-head lane stride (K of 2nd matmul)
    fuse_first_mm = out_size * te_pad <= 1024         # fused all-heads 1st matmul while small

    lt128 = _round_up(Lt, 128)
    t_lt = min(512, lt128)                            # output lane tile, 128-aligned
    cap_lf = 512 if vmem_cap >= (96 << 20) else 256
    t_lf = min(cap_lf, _round_up(Lf, sub))            # Lf tile, sublane aligned per dtype

    fp = functools.partial(_vmem_footprint, from_size=from_size, out_size=out_size,
                           te_pad=te_pad, itemsize=itemsize, fuse=fuse_first_mm)
    while fp(t_lf, t_lt) > budget and t_lf > sub:
        t_lf = max(sub, _round_up(t_lf // 2, sub))
    while fp(t_lf, t_lt) > budget and t_lt > 128:
        t_lt = max(128, (t_lt // 2) // 128 * 128)

    lf_pad = _round_up(Lf, t_lf)
    lt_pad = _round_up(Lt, t_lt)
    n_lf = lf_pad // t_lf
    n_lt = lt_pad // t_lt

    # ---- weight prep (tiny, one-time) --------------------------------------
    # U[f, o*Te + t]  ->  per-head slabs of width te_pad concatenated on the
    # lane axis; bias row (implicit from-ones column) kept separately in f32.
    U3 = U.reshape(Fe, out_size, Te)
    Uw = jnp.zeros((from_size, out_size, te_pad), dtype)
    Uw = Uw.at[:, :, :Te].set(U3[:from_size].astype(dtype))
    Uw = Uw.reshape(from_size, out_size * te_pad)
    Ub = jnp.zeros((1, out_size, te_pad), jnp.float32)
    if b0:
        Ub = Ub.at[0, :, :Te].set(U3[from_size].astype(jnp.float32))
    Ub = Ub.reshape(1, out_size * te_pad)

    # ---- activation prep ----------------------------------------------------
    # `from` keeps its raw feature width (bias handled in-kernel).
    from_p = from_tensor
    if lf_pad != Lf:
        from_p = jnp.zeros((B, lf_pad, from_size), dtype).at[:, :Lf, :].set(from_tensor)
    # `to` transposed once to (B, te_pad, lt_pad): the 2nd matmul is a plain
    # (K, N) contraction with N = t_lt lane-dense, no in-kernel relayout.
    # Ones row at index to_size implements the to-side bias; zero padding
    # elsewhere keeps the contraction exact.
    to_p = jnp.zeros((B, te_pad, lt_pad), dtype)
    to_p = to_p.at[:, :to_size, :Lt].set(jnp.swapaxes(to_tensor, 1, 2).astype(dtype))
    if b1:
        to_p = to_p.at[:, to_size, :Lt].set(jnp.ones((), dtype))

    kernel = functools.partial(_biaffine_kernel, out_size=out_size, te_pad=te_pad,
                               add_from_bias=bool(b0), fuse_first_mm=fuse_first_mm)

    flops = int(2 * B * lf_pad * from_size * out_size * te_pad
                + 2 * B * out_size * lf_pad * te_pad * lt_pad)
    bytes_accessed = int(itemsize * (B * lf_pad * from_size
                                     + B * te_pad * lt_pad
                                     + B * out_size * lf_pad * lt_pad)
                         + Uw.size * itemsize + Ub.size * 4)

    out = pl.pallas_call(
        kernel,
        out_shape=jax.ShapeDtypeStruct((B, out_size, lf_pad, lt_pad), dtype),
        grid_spec=pltpu.PrefetchScalarGridSpec(
            num_scalar_prefetch=0,
            # Batch outermost, Lf innermost: the (te_pad, t_lt) `to` tile stays
            # resident across the whole Lf sweep; only the tiny `from` tile and
            # the output block move per inner step.
            grid=(B, n_lt, n_lf),
            in_specs=[
                pl.BlockSpec((1, t_lf, from_size), lambda b, j, i: (b, i, 0)),
                pl.BlockSpec((1, te_pad, t_lt), lambda b, j, i: (b, 0, j)),
                pl.BlockSpec((from_size, out_size * te_pad), lambda b, j, i: (0, 0)),
                pl.BlockSpec((1, out_size * te_pad), lambda b, j, i: (0, 0)),
            ],
            out_specs=pl.BlockSpec((1, out_size, t_lf, t_lt),
                                   lambda b, j, i: (b, 0, i, j)),
        ),
        compiler_params=pltpu.CompilerParams(
            dimension_semantics=("parallel", "parallel", "parallel"),
            vmem_limit_bytes=vmem_limit),
        cost_estimate=pl.CostEstimate(flops=flops, transcendentals=0,
                                      bytes_accessed=bytes_accessed),
    )(from_p, to_p, Uw, Ub)

    out = out[:, :, :Lf, :Lt]
    if native_layout:
        # Kernel-native lane-dense layout; preferred for downstream consumers
        # (skips a full re-stream of the output tensor).
        return out
    # PyTorch-compatible layout (B, Lf, Lt, out).
    return jnp.transpose(out, (0, 2, 3, 1))


def _reference(from_tensor, to_tensor, U, *, out_size, bias=(True, True)):
    """Pure-JAX mirror of the PyTorch forward for verification."""
    if bias[0]:
        from_tensor = jnp.concatenate(
            [from_tensor, jnp.ones_like(from_tensor[..., :1])], axis=-1)
    if bias[1]:
        to_tensor = jnp.concatenate(
            [to_tensor, jnp.ones_like(to_tensor[..., :1])], axis=-1)
    B, Lf, _ = from_tensor.shape
    Lt = to_tensor.shape[1]
    Te = to_tensor.shape[2]
    affine = jnp.matmul(from_tensor, U.astype(from_tensor.dtype))   # (B, Lf, out*Te)
    affine = affine.reshape(B, Lf * out_size, Te)
    biaff = jnp.matmul(affine, jnp.swapaxes(to_tensor, 1, 2))       # (B, Lf*out, Lt)
    biaff = biaff.reshape(B, Lf, out_size, Lt)
    return jnp.swapaxes(biaff, 2, 3)                                # (B, Lf, Lt, out)


def _kaiming_uniform(key, shape, a=math.sqrt(5)):
    # PyTorch kaiming_uniform_ on a 2-D tensor: fan_in = shape[1]
    fan_in = shape[1]
    gain = math.sqrt(2.0 / (1.0 + a * a))
    bound = gain * math.sqrt(3.0 / fan_in)
    return jax.random.uniform(key, shape, jnp.float32, -bound, bound)


def _run_case(key, B, Lf, Lt, fs, ts, out_size, bias, dtype, atol, rtol):
    k1, k2, k3 = jax.random.split(key, 3)
    from_tensor = jax.random.normal(k1, (B, Lf, fs), jnp.float32).astype(dtype)
    to_tensor = jax.random.normal(k2, (B, Lt, ts), jnp.float32).astype(dtype)
    U = _kaiming_uniform(
        k3, (fs + int(bias[0]), out_size * (ts + int(bias[1])))).astype(dtype)

    out = multi_head_biaffine(from_tensor, to_tensor, U, from_size=fs, to_size=ts,
                              out_size=out_size, bias=bias)
    out = jax.block_until_ready(out)
    ref = _reference(from_tensor, to_tensor, U, out_size=out_size, bias=bias)
    assert out.shape == (B, Lf, Lt, out_size), out.shape
    assert jnp.allclose(out.astype(jnp.float32), ref.astype(jnp.float32),
                        atol=atol, rtol=rtol), "mismatch vs reference"

    # Kernel-native layout path (no wrapper relayout).
    out_n = multi_head_biaffine(from_tensor, to_tensor, U, from_size=fs, to_size=ts,
                                out_size=out_size, bias=bias, native_layout=True)
    out_n = jax.block_until_ready(out_n)
    ref_n = jnp.transpose(ref, (0, 3, 1, 2))
    assert out_n.shape == (B, out_size, Lf, Lt), out_n.shape
    assert jnp.allclose(out_n.astype(jnp.float32), ref_n.astype(jnp.float32),
                        atol=atol, rtol=rtol), "mismatch vs reference (native layout)"


if __name__ == "__main__":
    key = jax.random.PRNGKey(0)
    k_a, k_b, k_c = jax.random.split(key, 3)

    # Base config (matches the module's intended small shapes).
    _run_case(k_a, B=2, Lf=8, Lt=8, fs=32, ts=32, out_size=4,
              bias=(True, True), dtype=jnp.float32, atol=1e-4, rtol=1e-4)

    # Exercises lf/lt padding + slicing and a partial-bias config.
    _run_case(k_b, B=1, Lf=20, Lt=200, fs=24, ts=40, out_size=3,
              bias=(False, True), dtype=jnp.float32, atol=1e-3, rtol=1e-4)

    # bf16 inputs (16-row sublane tiling, mixed-precision intermediate).
    _run_case(k_c, B=2, Lf=16, Lt=16, fs=32, ts=32, out_size=4,
              bias=(True, False), dtype=jnp.bfloat16, atol=0.2, rtol=0.05)

    print("KERNEL_OK")
</pallas_src>

<mosaic_0001>
module attributes {stable_mosaic.version = 11 : i64} {
  func.func @_biaffine_kernel(%arg0: i32, %arg1: i32, %arg2: i32, %arg3: memref<1x8x32xf32, #tpu.memory_space<vmem>>, %arg4: memref<1x128x128xf32, #tpu.memory_space<vmem>>, %arg5: memref<32x512xf32, #tpu.memory_space<vmem>>, %arg6: memref<1x512xf32, #tpu.memory_space<vmem>>, %arg7: memref<1x4x8x128xf32, #tpu.memory_space<vmem>>) attributes {dimension_semantics = [#tpu.dimension_semantics<parallel>, #tpu.dimension_semantics<parallel>, #tpu.dimension_semantics<parallel>], iteration_bounds = array<i64: 2, 1, 1>, scalar_prefetch = 0 : i64, scratch_operands = 0 : i64, tpu.core_type = #tpu.core_type<tc>, window_params = [{transform_indices = @transform_0, window_bounds = array<i64: 1, 8, 32>}, {transform_indices = @transform_1, window_bounds = array<i64: 1, 128, 128>}, {pipeline_mode = #tpu.pipeline_mode<synchronous>, transform_indices = @transform_2, window_bounds = array<i64: 32, 512>}, {pipeline_mode = #tpu.pipeline_mode<synchronous>, transform_indices = @transform_3, window_bounds = array<i64: 1, 512>}, {transform_indices = @transform_4, window_bounds = array<i64: 1, 4, 8, 128>}]} {
    %c0 = arith.constant 0 : index
    %c0_0 = arith.constant 0 : index
    %c0_1 = arith.constant 0 : index
    %0 = vector.load %arg3[%c0, %c0_0, %c0_1] : memref<1x8x32xf32, #tpu.memory_space<vmem>>, vector<1x8x32xf32>
    %1 = vector.shape_cast %0 : vector<1x8x32xf32> to vector<8x32xf32>
    %c0_2 = arith.constant 0 : index
    %c0_3 = arith.constant 0 : index
    %c0_4 = arith.constant 0 : index
    %2 = vector.load %arg4[%c0_2, %c0_3, %c0_4] : memref<1x128x128xf32, #tpu.memory_space<vmem>>, vector<1x128x128xf32>
    %3 = vector.shape_cast %2 : vector<1x128x128xf32> to vector<128x128xf32>
    %c0_5 = arith.constant 0 : index
    %c0_6 = arith.constant 0 : index
    %4 = vector.load %arg5[%c0_5, %c0_6] : memref<32x512xf32, #tpu.memory_space<vmem>>, vector<32x512xf32>
    %cst = arith.constant dense<0.000000e+00> : vector<8x512xf32>
    %5 = tpu.matmul %1, %4, %cst {dimension_numbers = #tpu.dot_dimension_numbers<[1], [0], [0], [1], [0, 0, 1, 1], [], []>} : vector<8x32xf32>, vector<32x512xf32>, vector<8x512xf32> -> vector<8x512xf32>
    %c0_7 = arith.constant 0 : index
    %c0_8 = arith.constant 0 : index
    %6 = vector.load %arg6[%c0_7, %c0_8] : memref<1x512xf32, #tpu.memory_space<vmem>>, vector<1x512xf32>
    %7 = vector.broadcast %6 : vector<1x512xf32> to vector<8x512xf32>
    %8 = arith.addf %5, %7 : vector<8x512xf32>
    %9 = vector.extract_strided_slice %8 {offsets = [0, 0], sizes = [8, 128], strides = [1, 1]} : vector<8x512xf32> to vector<8x128xf32>
    %cst_9 = arith.constant dense<0.000000e+00> : vector<8x128xf32>
    %10 = tpu.matmul %9, %3, %cst_9 {dimension_numbers = #tpu.dot_dimension_numbers<[1], [0], [0], [1], [0, 0, 1, 1], [], []>} : vector<8x128xf32>, vector<128x128xf32>, vector<8x128xf32> -> vector<8x128xf32>
    %c0_10 = arith.constant 0 : index
    %c0_11 = arith.constant 0 : index
    %c0_12 = arith.constant 0 : index
    %c0_13 = arith.constant 0 : index
    %11 = vector.load %arg7[%c0_10, %c0_11, %c0_12, %c0_13] : memref<1x4x8x128xf32, #tpu.memory_space<vmem>>, vector<1x1x8x128xf32>
    %12 = vector.shape_cast %11 : vector<1x1x8x128xf32> to vector<8x128xf32>
    %13 = vector.shape_cast %10 : vector<8x128xf32> to vector<1x1x8x128xf32>
    tpu.vector_store %arg7[%c0_10, %c0_11, %c0_12, %c0_13], %13 {strides = array<i32>} : memref<1x4x8x128xf32, #tpu.memory_space<vmem>>, vector<1x1x8x128xf32>,
    %14 = vector.extract_strided_slice %8 {offsets = [0, 128], sizes = [8, 128], strides = [1, 1]} : vector<8x512xf32> to vector<8x128xf32>
    %cst_14 = arith.constant dense<0.000000e+00> : vector<8x128xf32>
    %15 = tpu.matmul %14, %3, %cst_14 {dimension_numbers = #tpu.dot_dimension_numbers<[1], [0], [0], [1], [0, 0, 1, 1], [], []>} : vector<8x128xf32>, vector<128x128xf32>, vector<8x128xf32> -> vector<8x128xf32>
    %c0_15 = arith.constant 0 : index
    %c1 = arith.constant 1 : index
    %c0_16 = arith.constant 0 : index
    %c0_17 = arith.constant 0 : index
    %16 = vector.load %arg7[%c0_15, %c1, %c0_16, %c0_17] : memref<1x4x8x128xf32, #tpu.memory_space<vmem>>, vector<1x1x8x128xf32>
    %17 = vector.shape_cast %16 : vector<1x1x8x128xf32> to vector<8x128xf32>
    %18 = vector.shape_cast %15 : vector<8x128xf32> to vector<1x1x8x128xf32>
    tpu.vector_store %arg7[%c0_15, %c1, %c0_16, %c0_17], %18 {strides = array<i32>} : memref<1x4x8x128xf32, #tpu.memory_space<vmem>>, vector<1x1x8x128xf32>,
    %19 = vector.extract_strided_slice %8 {offsets = [0, 256], sizes = [8, 128], strides = [1, 1]} : vector<8x512xf32> to vector<8x128xf32>
    %cst_18 = arith.constant dense<0.000000e+00> : vector<8x128xf32>
    %20 = tpu.matmul %19, %3, %cst_18 {dimension_numbers = #tpu.dot_dimension_numbers<[1], [0], [0], [1], [0, 0, 1, 1], [], []>} : vector<8x128xf32>, vector<128x128xf32>, vector<8x128xf32> -> vector<8x128xf32>
    %c0_19 = arith.constant 0 : index
    %c2 = arith.constant 2 : index
    %c0_20 = arith.constant 0 : index
    %c0_21 = arith.constant 0 : index
    %21 = vector.load %arg7[%c0_19, %c2, %c0_20, %c0_21] : memref<1x4x8x128xf32, #tpu.memory_space<vmem>>, vector<1x1x8x128xf32>
    %22 = vector.shape_cast %21 : vector<1x1x8x128xf32> to vector<8x128xf32>
    %23 = vector.shape_cast %20 : vector<8x128xf32> to vector<1x1x8x128xf32>
    tpu.vector_store %arg7[%c0_19, %c2, %c0_20, %c0_21], %23 {strides = array<i32>} : memref<1x4x8x128xf32, #tpu.memory_space<vmem>>, vector<1x1x8x128xf32>,
    %24 = vector.extract_strided_slice %8 {offsets = [0, 384], sizes = [8, 128], strides = [1, 1]} : vector<8x512xf32> to vector<8x128xf32>
    %cst_22 = arith.constant dense<0.000000e+00> : vector<8x128xf32>
    %25 = tpu.matmul %24, %3, %cst_22 {dimension_numbers = #tpu.dot_dimension_numbers<[1], [0], [0], [1], [0, 0, 1, 1], [], []>} : vector<8x128xf32>, vector<128x128xf32>, vector<8x128xf32> -> vector<8x128xf32>
    %c0_23 = arith.constant 0 : index
    %c3 = arith.constant 3 : index
    %c0_24 = arith.constant 0 : index
    %c0_25 = arith.constant 0 : index
    %26 = vector.load %arg7[%c0_23, %c3, %c0_24, %c0_25] : memref<1x4x8x128xf32, #tpu.memory_space<vmem>>, vector<1x1x8x128xf32>
    %27 = vector.shape_cast %26 : vector<1x1x8x128xf32> to vector<8x128xf32>
    %28 = vector.shape_cast %25 : vector<8x128xf32> to vector<1x1x8x128xf32>
    tpu.vector_store %arg7[%c0_23, %c3, %c0_24, %c0_25], %28 {strides = array<i32>} : memref<1x4x8x128xf32, #tpu.memory_space<vmem>>, vector<1x1x8x128xf32>,
    return
  }
  func.func @transform_0(%arg0: i32, %arg1: i32, %arg2: i32) -> (i32, i32, i32) {
    %c0_i32 = arith.constant 0 : i32
    %c0_i32_0 = arith.constant 0 : i32
    return %arg0, %arg2, %c0_i32 : i32, i32, i32
  }
  func.func @transform_1(%arg0: i32, %arg1: i32, %arg2: i32) -> (i32, i32, i32) {
    %c0_i32 = arith.constant 0 : i32
    %c0_i32_0 = arith.constant 0 : i32
    return %arg0, %c0_i32, %arg1 : i32, i32, i32
  }
  func.func @transform_2(%arg0: i32, %arg1: i32, %arg2: i32) -> (i32, i32) {
    %c0_i32 = arith.constant 0 : i32
    %c0_i32_0 = arith.constant 0 : i32
    %c0_i32_1 = arith.constant 0 : i32
    return %c0_i32, %c0_i32_0 : i32, i32
  }
  func.func @transform_3(%arg0: i32, %arg1: i32, %arg2: i32) -> (i32, i32) {
    %c0_i32 = arith.constant 0 : i32
    %c0_i32_0 = arith.constant 0 : i32
    %c0_i32_1 = arith.constant 0 : i32
    return %c0_i32, %c0_i32_0 : i32, i32
  }
  func.func @transform_4(%arg0: i32, %arg1: i32, %arg2: i32) -> (i32, i32, i32, i32) {
    %c0_i32 = arith.constant 0 : i32
    %c0_i32_0 = arith.constant 0 : i32
    return %arg0, %c0_i32, %arg2, %arg1 : i32, i32, i32, i32
  }
}

</mosaic_0001>

<llo_original>
// kernel: tpu_custom_call.1
$region0: #{tpu_custom_call.1}
  #allocation0 [shape = 'u32[]', space=smem, size = 0x4, offset = 0x4, fixed_abs, tag = 'smem constant byte address 0x4 - core index']
  #allocation1 [shape = 'u32[144,128]{1,0:T(1,128)}', space=vmem, size = 0x12000, scoped, tag = 'internal scratch']
  %s0 = inlined_call_operand.hbm [shape: f32[2,8,32], index: 0, kind: input, shape index: {}]
  %s1 = inlined_call_operand.hbm [shape: f32[2,128,128], index: 1, kind: input, shape index: {}]
  %s2 = inlined_call_operand.hbm [shape: f32[32,512], index: 2, kind: input, shape index: {}]
  %s3 = inlined_call_operand.vmem [shape: f32[1,512], index: 3, kind: input, shape index: {}]
  %s4 = inlined_call_operand.hbm [shape: f32[2,4,8,128], index: 4, kind: output, shape index: {}]
  %s5 = sld [smem:[#allocation0]]
  $region61: #{tpu_custom_call.1} parent=0
    _
  %s7 = ssub.s32 1, %s5
  %s8 = scalar_select 0, %s7, %s5
  $region1: #{tpu_custom_call.1} parent=0
    #allocation2 [shape = 'u8[8192]{0}', space=vmem, size = 0x2000, scoped, tag = 'input window, operand 0']
    #allocation3 [shape = 's32[2]{0}', space=sflag, size = 0x8, scoped, tag = 'scoped memory for tpu_custom_call.1']
    #allocation4 [shape = 's32[2]{0}', space=sflag, size = 0x8, scoped, tag = 'scoped memory for tpu_custom_call.1']
    #allocation5 [shape = 'u8[131072]{0}', space=vmem, size = 0x20000, scoped, tag = 'input window, operand 1']
    #allocation6 [shape = 's32[2]{0}', space=sflag, size = 0x8, scoped, tag = 'scoped memory for tpu_custom_call.1']
    #allocation7 [shape = 'u8[65536]{0}', space=vmem, size = 0x10000, scoped, tag = 'input window, operand 2, single buffered']
    #allocation8 [shape = 'u8[32768]{0}', space=vmem, size = 0x8000, scoped, tag = 'output window, operand 0']
    %9 = vsyncpa [#allocation3], 0
    %s10 = scalar_lea.sflag [#allocation3], 1
    %11 = vsyncpa %s10, 0
    %12 = vsyncpa [#allocation6], 0
    %s13 = scalar_lea.sflag [#allocation6], 1
    %14 = vsyncpa %s13, 0
    %15 = vsyncpa [#allocation4], 0
    %s16 = scalar_lea.sflag [#allocation4], 1
    %17 = vsyncpa %s16, 0
    loop: start=0, step=1, limit=4
    $region2: #{tpu_custom_call.1} parent=1 // loop_pre_header
      _
    $region3: #{tpu_custom_call.1} parent=1 // loop_header
      %s19 = sphi 0, %s23
      %p20 = scmp.ge.s32.totalorder %s19, 4
      %s26 = sphi 0, %s45
      %s27 = sphi 0, %s41
      %s28 = sphi 0, %s37
      %s29 = sphi 0, %s26
      %s30 = sphi 0, %s27
      %s31 = sphi 0, %s28
      %s32 = sphi 0, %s29
      %s33 = sphi 0, %s30
      %s34 = sphi 0, %s31
      %s50 = sphi 0, %s52
      %s53 = sphi 0, %s50
      %s54 = sphi 0, %s53
      %s70 = sphi 0, %s54
      %s78 = sphi 0, %s80
      %s81 = sphi 0, %s78
      %s82 = sphi 0, %s81
      %s98 = sphi 0, %s82
      %s102 = sphi 0, %s102
      %s104 = sphi 0, %s102
      %s105 = sphi 0, %s104
      %s119 = sphi 0, %s105
      %s123 = sphi 0, %s123
      %s125 = sphi 0, %s123
      %s126 = sphi 0, %s125
      %s140 = sphi 0, %s126
      %s150 = sphi 0, %s152
      %s153 = sphi 0, %s150
      %s154 = sphi 0, %s153
      %s170 = sphi 0, %s154
    $region4: #{tpu_custom_call.1} parent=1 // loop_header_branch
      %22 = sbr.rel (%p20) target = $region8
    $region5: #{tpu_custom_call.1} parent=1 // loop_body
      %s24 = ssub.s32 %s19, 1
      %s25 = ssub.s32 %s19, 2
      %s35 = sadd.s32 1, %s28
      %p36 = scmp.ge.s32.totalorder %s35, 1
      %s37 = scalar_select %p36, 0, %s35
      %s38 = sadd.s32 1, %s27
      %s39 = scalar_select %p36, %s38, %s27
      %p40 = scmp.ge.s32.totalorder %s39, 1
      %s41 = scalar_select %p40, 0, %s39
      %s42 = sadd.s32 1, %s26
      %s43 = scalar_select %p40, %s42, %s26
      %p44 = scmp.ge.s32.totalorder %s43, 2
      %s45 = scalar_select %p44, 0, %s43
      %s46 = ssub.s32 %s26, %s45
      %s47 = ssub.s32 %s28, %s37
      %s48 = sor.u32 %s46, %s47
      %p49 = scmp.eq.s32.totalorder %s48, 0
      %s51 = sadd.s32 %s50, 1
      %s52 = scalar_select %p49, %s50, %s51
      %p55 = pneg %p49
      %p56 = scmp.eq.s32.totalorder %s19, 1
      %p57 = por %p55, %p56
      %p58 = scmp.ne.s32.totalorder %s50, %s53
      %p59 = scmp.eq.s32.totalorder %s19, 0
      %p60 = por %p58, %p59
      %p61 = scmp.ne.s32.totalorder %s50, %s53
      %p62 = scmp.eq.s32.totalorder %s24, 1
      %p63 = por %p61, %p62
      %p64 = scmp.ne.s32.totalorder %s53, %s54
      %p65 = scmp.eq.s32.totalorder %s24, 0
      %p66 = por %p64, %p65
      %p67 = scmp.ne.s32.totalorder %s53, %s54
      %p68 = scmp.eq.s32.totalorder %s25, 1
      %p69 = por %p67, %p68
      %p71 = scmp.ne.s32.totalorder %s54, %s70
      %p72 = scmp.eq.s32.totalorder %s25, 0
      %p73 = por %p71, %p72
      %s74 = ssub.s32 %s26, %s45
      %s75 = ssub.s32 %s27, %s41
      %s76 = sor.u32 %s74, %s75
      %p77 = scmp.eq.s32.totalorder %s76, 0
      %s79 = sadd.s32 %s78, 1
      %s80 = scalar_select %p77, %s78, %s79
      %p83 = pneg %p77
      %p84 = scmp.eq.s32.totalorder %s19, 1
      %p85 = por %p83, %p84
      %p86 = scmp.ne.s32.totalorder %s78, %s81
      %p87 = scmp.eq.s32.totalorder %s19, 0
      %p88 = por %p86, %p87
      %p89 = scmp.ne.s32.totalorder %s78, %s81
      %p90 = scmp.eq.s32.totalorder %s24, 1
      %p91 = por %p89, %p90
      %p92 = scmp.ne.s32.totalorder %s81, %s82
      %p93 = scmp.eq.s32.totalorder %s24, 0
      %p94 = por %p92, %p93
      %p95 = scmp.ne.s32.totalorder %s81, %s82
      %p96 = scmp.eq.s32.totalorder %s25, 1
      %p97 = por %p95, %p96
      %p99 = scmp.ne.s32.totalorder %s82, %s98
      %p100 = scmp.eq.s32.totalorder %s25, 0
      %p101 = por %p99, %p100
      %s103 = sadd.s32 %s102, 1
      %p106 = scmp.eq.s32.totalorder %s19, 1
      %p107 = scmp.ne.s32.totalorder %s102, %s104
      %p108 = scmp.eq.s32.totalorder %s19, 0
      %p109 = por %p107, %p108
      %p110 = scmp.ne.s32.totalorder %s102, %s104
      %p111 = scmp.eq.s32.totalorder %s24, 1
      %p112 = por %p110, %p111
      %p113 = scmp.ne.s32.totalorder %s104, %s105
      %p114 = scmp.eq.s32.totalorder %s24, 0
      %p115 = por %p113, %p114
      %p116 = scmp.ne.s32.totalorder %s104, %s105
      %p117 = scmp.eq.s32.totalorder %s25, 1
      %p118 = por %p116, %p117
      %p120 = scmp.ne.s32.totalorder %s105, %s119
      %p121 = scmp.eq.s32.totalorder %s25, 0
      %p122 = por %p120, %p121
      %s124 = sadd.s32 %s123, 1
      %p127 = scmp.eq.s32.totalorder %s19, 1
      %p128 = scmp.ne.s32.totalorder %s123, %s125
      %p129 = scmp.eq.s32.totalorder %s19, 0
      %p130 = por %p128, %p129
      %p131 = scmp.ne.s32.totalorder %s123, %s125
      %p132 = scmp.eq.s32.totalorder %s24, 1
      %p133 = por %p131, %p132
      %p134 = scmp.ne.s32.totalorder %s125, %s126
      %p135 = scmp.eq.s32.totalorder %s24, 0
      %p136 = por %p134, %p135
      %p137 = scmp.ne.s32.totalorder %s125, %s126
      %p138 = scmp.eq.s32.totalorder %s25, 1
      %p139 = por %p137, %p138
      %p141 = scmp.ne.s32.totalorder %s126, %s140
      %p142 = scmp.eq.s32.totalorder %s25, 0
      %p143 = por %p141, %p142
      %s144 = ssub.s32 %s26, %s45
      %s145 = ssub.s32 %s28, %s37
      %s146 = sor.u32 %s144, %s145
      %s147 = ssub.s32 %s27, %s41
      %s148 = sor.u32 %s146, %s147
      %p149 = scmp.eq.s32.totalorder %s148, 0
      %s151 = sadd.s32 %s150, 1
      %s152 = scalar_select %p149, %s150, %s151
      %p155 = pneg %p149
      %p156 = scmp.eq.s32.totalorder %s19, 1
      %p157 = por %p155, %p156
      %p158 = scmp.ne.s32.totalorder %s150, %s153
      %p159 = scmp.eq.s32.totalorder %s19, 0
      %p160 = por %p158, %p159
      %p161 = scmp.ne.s32.totalorder %s150, %s153
      %p162 = scmp.eq.s32.totalorder %s24, 1
      %p163 = por %p161, %p162
      %p164 = scmp.ne.s32.totalorder %s153, %s154
      %p165 = scmp.eq.s32.totalorder %s24, 0
      %p166 = por %p164, %p165
      %p167 = scmp.ne.s32.totalorder %s153, %s154
      %p168 = scmp.eq.s32.totalorder %s25, 1
      %p169 = por %p167, %p168
      %p171 = scmp.ne.s32.totalorder %s154, %s170
      %p172 = scmp.eq.s32.totalorder %s25, 0
      %p173 = por %p171, %p172
      %p174 = scmp.le.s32.totalorder 1, %s19
      %p175 = scmp.lt.s32.totalorder %s19, 3
      %p176 = pnand %p174, %p175
      %p177 = pneg %p176
      // Predicated region
      $region9: #{tpu_custom_call.1} parent=5 // pred_check
        _
      $region10: #{tpu_custom_call.1} parent=5 // pred_check_branch
        %179 = sbr.rel (%p176) target = $region12
      $region11: #{tpu_custom_call.1} parent=5 // pred_region
        %s180 = ssub.s32 %s19, 1
        // Predicated region
        $region13: #{tpu_custom_call.1} parent=11 // pred_check
          %p181 = pneg %p115
        $region14: #{tpu_custom_call.1} parent=11 // pred_check_branch
          %183 = sbr.rel (%p181) target = $region16
        $region15: #{tpu_custom_call.1} parent=11 // pred_region
          %s185 = ssub.s32 2048, 2048
          %186 = vsyncadd [#allocation6], %s185
          %s187 = sshll.u32 [#allocation7], 4
          %s188 = int_to_ptr.vmem [resolvable:$true] %s187
          %193 = dma.hbm_to_vmem [thread:$0]  %s2, 2048, %s188, [#allocation6], 512, 512, 32
        $region16: #{tpu_custom_call.1} parent=11 // pred_fallthru
          _
        // Predicated region
        $region17: #{tpu_custom_call.1} parent=11 // pred_check
          %p194 = pneg %p136
        $region18: #{tpu_custom_call.1} parent=11 // pred_check_branch
          %196 = sbr.rel (%p194) target = $region20
        $region19: #{tpu_custom_call.1} parent=11 // pred_region
          _
        $region20: #{tpu_custom_call.1} parent=11 // pred_fallthru
          _
      $region12: #{tpu_custom_call.1} parent=5 // pred_fallthru
        _
      %p197 = scmp.lt.s32.totalorder %s19, 2
      // Predicated region
      $region21: #{tpu_custom_call.1} parent=5 // pred_check
        %p198 = pneg %p197
      $region22: #{tpu_custom_call.1} parent=5 // pred_check_branch
        %200 = sbr.rel (%p198) target = $region24
      $region23: #{tpu_custom_call.1} parent=5 // pred_region
        // Predicated region
        $region25: #{tpu_custom_call.1} parent=23 // pred_check
          %p201 = pneg %p60
        $region26: #{tpu_custom_call.1} parent=23 // pred_check_branch
          %203 = sbr.rel (%p201) target = $region28
        $region27: #{tpu_custom_call.1} parent=23 // pred_region
          %s204 = sand.u32 %s50, 1
          %s205 = scalar_lea.sflag [#allocation3], %s204
          %s206 = sand.u32 %s50, 1
          %s207 = smul.addr %s206, 8
          %s208 = scalar_lea.vmem [#allocation2], %s207
          %s210 = ssub.s32 128, 128
          %211 = vsyncadd %s205, %s210
          %s212 = sadd.s32 %s28, %s26
          %s213 = smul.addr %s212, 128
          %s214 = scalar_lea.hbm %s0, %s213
          %s216 = sshll.u32 %s208, 4
          %s217 = int_to_ptr.vmem [resolvable:$true] %s216
          %219 = dma.hbm_to_vmem [thread:$0]  %s214, 128, %s217, %s205
        $region28: #{tpu_custom_call.1} parent=23 // pred_fallthru
          _
        // Predicated region
        $region29: #{tpu_custom_call.1} parent=23 // pred_check
          %p220 = pneg %p88
        $region30: #{tpu_custom_call.1} parent=23 // pred_check_branch
          %222 = sbr.rel (%p220) target = $region32
        $region31: #{tpu_custom_call.1} parent=23 // pred_region
          %s223 = sand.u32 %s19, 1
          %s224 = scalar_lea.sflag [#allocation6], %s223
          %s225 = sand.u32 %s78, 1
          %s226 = smul.addr %s225, 128
          %s227 = scalar_lea.vmem [#allocation5], %s226
          %s229 = ssub.s32 2048, 2048
          %230 = vsyncadd %s224, %s229
          %s231 = smul.addr %s26, 16
          %s232 = sadd.s32 %s27, %s231
          %s233 = smul.addr %s232, 128
          %s234 = scalar_lea.hbm %s1, %s233
          %s235 = sshll.u32 %s227, 4
          %s236 = int_to_ptr.vmem [resolvable:$true] %s235
          %241 = dma.hbm_to_vmem [thread:$0]  %s234, 2048, %s236, %s224, 128, 128, 8
        $region32: #{tpu_custom_call.1} parent=23 // pred_fallthru
          _
      $region24: #{tpu_custom_call.1} parent=5 // pred_fallthru
        _
      %p242 = scmp.le.s32.totalorder 1, %s19
      %p243 = scmp.lt.s32.totalorder %s19, 3
      %p244 = pnand %p242, %p243
      %p245 = pneg %p244
      // Predicated region
      $region33: #{tpu_custom_call.1} parent=5 // pred_check
        _
      $region34: #{tpu_custom_call.1} parent=5 // pred_check_branch
        %247 = sbr.rel (%p244) target = $region36
      $region35: #{tpu_custom_call.1} parent=5 // pred_region
        %s248 = ssub.s32 %s19, 1
        %s249 = sand.u32 %s53, 1
        %s250 = scalar_lea.sflag [#allocation3], %s249
        %s251 = sand.u32 %s53, 1
        %s252 = smul.addr %s251, 8
        %s253 = scalar_lea.vmem [#allocation2], %s252
        // Predicated region
        $region37: #{tpu_custom_call.1} parent=35 // pred_check
          %p254 = pneg %p66
        $region38: #{tpu_custom_call.1} parent=35 // pred_check_branch
          %256 = sbr.rel (%p254) target = $region40
        $region39: #{tpu_custom_call.1} parent=35 // pred_region
          %257 = dma.done %s250, 128
        $region40: #{tpu_custom_call.1} parent=35 // pred_fallthru
          _
        %s258 = sand.u32 %s24, 1
        %s259 = scalar_lea.sflag [#allocation6], %s258
        %s260 = sand.u32 %s81, 1
        %s261 = smul.addr %s260, 128
        %s262 = scalar_lea.vmem [#allocation5], %s261
        // Predicated region
        $region41: #{tpu_custom_call.1} parent=35 // pred_check
          %p263 = pneg %p94
        $region42: #{tpu_custom_call.1} parent=35 // pred_check_branch
          %265 = sbr.rel (%p263) target = $region44
        $region43: #{tpu_custom_call.1} parent=35 // pred_region
          %266 = dma.done %s259, 2048
        $region44: #{tpu_custom_call.1} parent=35 // pred_fallthru
          _
        // Predicated region
        $region45: #{tpu_custom_call.1} parent=35 // pred_check
          %p267 = pneg %p115
        $region46: #{tpu_custom_call.1} parent=35 // pred_check_branch
          %269 = sbr.rel (%p267) target = $region48
        $region47: #{tpu_custom_call.1} parent=35 // pred_region
          %270 = dma.done [#allocation6], 2048
        $region48: #{tpu_custom_call.1} parent=35 // pred_fallthru
          _
        %s271 = sand.u32 %s53, 1
        %s272 = scalar_lea.sflag [#allocation3], %s271
        %s273 = sand.u32 %s53, 1
        %s274 = smul.addr %s273, 8
        %s275 = scalar_lea.vmem [#allocation2], %s274
        %p276 = pneg %p66
        %p277 = pneg %p63
        %s278 = sand.u32 %s24, 1
        %s279 = scalar_lea.sflag [#allocation6], %s278
        %s280 = sand.u32 %s81, 1
        %s281 = smul.addr %s280, 128
        %s282 = scalar_lea.vmem [#allocation5], %s281
        %p283 = pneg %p94
        %p284 = pneg %p91
        %p285 = pneg %p115
        %p286 = pneg %p112
        %p287 = pneg %p136
        %p288 = pneg %p133
        %p289 = pneg %p166
        %p290 = pneg %p163
        %s291 = sand.u32 %s153, 1
        %s292 = scalar_lea.sflag [#allocation4], %s291
        %s293 = sand.u32 %s153, 1
        %s294 = smul.addr %s293, 32
        %s295 = scalar_lea.vmem [#allocation8], %s294
        %v296 = vld [vmem:[%s253] sm:$0xff]
        %v297 = vld [vmem:[%s262] sm:$0xff]
        %v298 = vld [vmem:[%s262 + $0x8] sm:$0xff]
        %v299 = vld [vmem:[%s262 + $0x10] sm:$0xff]
        %v300 = vld [vmem:[%s262 + $0x18] sm:$0xff]
        %v301 = vld [vmem:[%s262 + $0x20] sm:$0xff]
        %v302 = vld [vmem:[%s262 + $0x28] sm:$0xff]
        %v303 = vld [vmem:[%s262 + $0x30] sm:$0xff]
        %v304 = vld [vmem:[%s262 + $0x38] sm:$0xff]
        %v305 = vld [vmem:[%s262 + $0x40] sm:$0xff]
        %v306 = vld [vmem:[%s262 + $0x48] sm:$0xff]
        %v307 = vld [vmem:[%s262 + $0x50] sm:$0xff]
        %v308 = vld [vmem:[%s262 + $0x58] sm:$0xff]
        %v309 = vld [vmem:[%s262 + $0x60] sm:$0xff]
        %v310 = vld [vmem:[%s262 + $0x68] sm:$0xff]
        %v311 = vld [vmem:[%s262 + $0x70] sm:$0xff]
        %v312 = vld [vmem:[%s262 + $0x78] sm:$0xff]
        %v313 = vld [vmem:[#allocation7] sm:$0xff]
        %v314 = vld [vmem:[#allocation7 + $0x8] sm:$0xff]
        %v315 = vld [vmem:[#allocation7 + $0x10] sm:$0xff]
        %v316 = vld [vmem:[#allocation7 + $0x18] sm:$0xff]
        %v317 = vld [vmem:[#allocation7 + $0x20] sm:$0xff]
        %v318 = vld [vmem:[#allocation7 + $0x28] sm:$0xff]
        %v319 = vld [vmem:[#allocation7 + $0x30] sm:$0xff]
        %v320 = vld [vmem:[#allocation7 + $0x38] sm:$0xff]
        %v321 = vld [vmem:[#allocation7 + $0x40] sm:$0xff]
        %v322 = vld [vmem:[#allocation7 + $0x48] sm:$0xff]
        %v323 = vld [vmem:[#allocation7 + $0x50] sm:$0xff]
        %v324 = vld [vmem:[#allocation7 + $0x58] sm:$0xff]
        %v325 = vld [vmem:[#allocation7 + $0x60] sm:$0xff]
        %v326 = vld [vmem:[#allocation7 + $0x68] sm:$0xff]
        %v327 = vld [vmem:[#allocation7 + $0x70] sm:$0xff]
        %v328 = vld [vmem:[#allocation7 + $0x78] sm:$0xff]
        %v329 = vld [vmem:[%s3] sm:$0xf]
        %v331 = vlaneseq
        %v332 = vshrl.u32 %v331, 7
        %v333 = vsub.s32 0, %v332
        %v334 = vrot.slane %v329, %v333
        %v335 = vlaneseq
        %v336 = vshrl.u32 %v335, 7
        %v337 = vsub.s32 1, %v336
        %v338 = vrot.slane %v329, %v337
        %v339 = vlaneseq
        %v340 = vshrl.u32 %v339, 7
        %v341 = vsub.s32 2, %v340
        %v342 = vrot.slane %v329, %v341
        %v343 = vlaneseq
        %v344 = vshrl.u32 %v343, 7
        %v345 = vsub.s32 3, %v344
        %v346 = vrot.slane %v329, %v345
        %vm351 = vcmask 261120
        %v353 = vsel %vm351, %v296, 0
        %355 = vmatprep.subr.mxu0 %v314
        %356 = vmatpush1.msra.mxu0 %v313
        %357 = vmatprep.subr.mxu0 %v318
        %358 = vmatpush1.msra.mxu0 %v317
        %359 = vmatprep.subr.mxu0 %v322
        %360 = vmatpush1.msra.mxu0 %v321
        %361 = vmatprep.subr.mxu0 %v326
        %362 = vmatpush1.msra.mxu0 %v325
        %363 = vmatprep.subr.mxu0 0.0
        %364 = vmatpush1.msra.mxu0 0.0
        %365 = vmatprep.subr.mxu0 0.0
        %366 = vmatpush1.msra.mxu0 0.0
        %367 = vmatprep.subr.mxu0 0.0
        %368 = vmatpush1.msra.mxu0 0.0
        %369 = vmatprep.subr.mxu0 0.0
        %370 = vmatpush1.msra.mxu0 0.0
        %371 = vmatprep.subr.mxu0 0.0
        %372 = vmatpush1.msra.mxu0 0.0
        %373 = vmatprep.subr.mxu0 0.0
        %374 = vmatpush1.msra.mxu0 0.0
        %375 = vmatprep.subr.mxu0 0.0
        %376 = vmatpush1.msra.mxu0 0.0
        %377 = vmatprep.subr.mxu0 0.0
        %378 = vmatpush1.msra.mxu0 0.0
        %379 = vmatprep.subr.mxu0 0.0
        %380 = vmatpush1.msra.mxu0 0.0
        %381 = vmatprep.subr.mxu0 0.0
        %382 = vmatpush1.msra.mxu0 0.0
        %383 = vmatprep.subr.mxu0 0.0
        %384 = vmatpush1.msra.mxu0 0.0
        %385 = vmatprep.subr.mxu0 0.0
        %386 = vmatpush1.msra.mxu0 0.0
        %387 = vmatprep.subr.mxu0 0.0
        %388 = vmatpush1.msra.mxu0 0.0
        %389 = vmatprep.subr.mxu0 0.0
        %390 = vmatpush1.msra.mxu0 0.0
        %391 = vmatprep.subr.mxu0 0.0
        %392 = vmatpush1.msra.mxu0 0.0
        %393 = vmatprep.subr.mxu0 0.0
        %394 = vmatpush1.msra.mxu0 0.0
        %395 = vmatprep.subr.mxu0 0.0
        %396 = vmatpush1.msra.mxu0 0.0
        %397 = vmatprep.subr.mxu0 0.0
        %398 = vmatpush1.msra.mxu0 0.0
        %399 = vmatprep.subr.mxu0 0.0
        %400 = vmatpush1.msra.mxu0 0.0
        %401 = vmatprep.subr.mxu0 0.0
        %402 = vmatpush1.msra.mxu0 0.0
        %403 = vmatprep.subr.mxu0 0.0
        %404 = vmatpush1.msra.mxu0 0.0
        %405 = vmatprep.subr.mxu0 0.0
        %406 = vmatpush1.msra.mxu0 0.0
        %407 = vmatprep.subr.mxu0 0.0
        %408 = vmatpush1.msra.mxu0 0.0
        %409 = vmatprep.subr.mxu0 0.0
        %410 = vmatpush1.msra.mxu0 0.0
        %411 = vmatprep.subr.mxu0 0.0
        %412 = vmatpush1.msra.mxu0 0.0
        %413 = vmatprep.subr.mxu0 0.0
        %414 = vmatpush1.msra.mxu0 0.0
        %415 = vmatprep.subr.mxu0 0.0
        %416 = vmatpush1.msra.mxu0 0.0
        %417 = vmatprep.subr.mxu0 0.0
        %418 = vmatpush1.msra.mxu0 0.0
        %419 = vmatprep.mubr.f32.mxu0 0.0
        %420 = vmatmul.mubr.f32.gmra.mrb[0].mxu0 %v353
        %v421 = vpop.f32.mrb[0].mxu0
        %v422 = vadd.f32 %v334, %v421
        %v423 = vpop.f32.mrb[0].mxu0
        %v424 = vadd.f32 %v338, %v423
        %425 = vdwg.mxu0
        %426 = vmatprep.subr.mxu0 %v316
        %427 = vmatpush1.msra.mxu0 %v315
        %428 = vmatprep.subr.mxu0 %v320
        %429 = vmatpush1.msra.mxu0 %v319
        %430 = vmatprep.subr.mxu0 %v324
        %431 = vmatpush1.msra.mxu0 %v323
        %432 = vmatprep.subr.mxu0 %v328
        %433 = vmatpush1.msra.mxu0 %v327
        %434 = vmatprep.subr.mxu0 0.0
        %435 = vmatpush1.msra.mxu0 0.0
        %436 = vmatprep.subr.mxu0 0.0
        %437 = vmatpush1.msra.mxu0 0.0
        %438 = vmatprep.subr.mxu0 0.0
        %439 = vmatpush1.msra.mxu0 0.0
        %440 = vmatprep.subr.mxu0 0.0
        %441 = vmatpush1.msra.mxu0 0.0
        %442 = vmatprep.subr.mxu0 0.0
        %443 = vmatpush1.msra.mxu0 0.0
        %444 = vmatprep.subr.mxu0 0.0
        %445 = vmatpush1.msra.mxu0 0.0
        %446 = vmatprep.subr.mxu0 0.0
        %447 = vmatpush1.msra.mxu0 0.0
        %448 = vmatprep.subr.mxu0 0.0
        %449 = vmatpush1.msra.mxu0 0.0
        %450 = vmatprep.subr.mxu0 0.0
        %451 = vmatpush1.msra.mxu0 0.0
        %452 = vmatprep.subr.mxu0 0.0
        %453 = vmatpush1.msra.mxu0 0.0
        %454 = vmatprep.subr.mxu0 0.0
        %455 = vmatpush1.msra.mxu0 0.0
        %456 = vmatprep.subr.mxu0 0.0
        %457 = vmatpush1.msra.mxu0 0.0
        %458 = vmatprep.subr.mxu0 0.0
        %459 = vmatpush1.msra.mxu0 0.0
        %460 = vmatprep.subr.mxu0 0.0
        %461 = vmatpush1.msra.mxu0 0.0
        %462 = vmatprep.subr.mxu0 0.0
        %463 = vmatpush1.msra.mxu0 0.0
        %464 = vmatprep.subr.mxu0 0.0
        %465 = vmatpush1.msra.mxu0 0.0
        %466 = vmatprep.subr.mxu0 0.0
        %467 = vmatpush1.msra.mxu0 0.0
        %468 = vmatprep.subr.mxu0 0.0
        %469 = vmatpush1.msra.mxu0 0.0
        %470 = vmatprep.subr.mxu0 0.0
        %471 = vmatpush1.msra.mxu0 0.0
        %472 = vmatprep.subr.mxu0 0.0
        %473 = vmatpush1.msra.mxu0 0.0
        %474 = vmatprep.subr.mxu0 0.0
        %475 = vmatpush1.msra.mxu0 0.0
        %476 = vmatprep.subr.mxu0 0.0
        %477 = vmatpush1.msra.mxu0 0.0
        %478 = vmatprep.subr.mxu0 0.0
        %479 = vmatpush1.msra.mxu0 0.0
        %480 = vmatprep.subr.mxu0 0.0
        %481 = vmatpush1.msra.mxu0 0.0
        %482 = vmatprep.subr.mxu0 0.0
        %483 = vmatpush1.msra.mxu0 0.0
        %484 = vmatprep.subr.mxu0 0.0
        %485 = vmatpush1.msra.mxu0 0.0
        %486 = vmatprep.subr.mxu0 0.0
        %487 = vmatpush1.msra.mxu0 0.0
        %488 = vmatprep.subr.mxu0 0.0
        %489 = vmatpush1.msra.mxu0 0.0
        %490 = vmatprep.mubr.f32.mxu0 0.0
        %491 = vmatmul.mubr.f32.gmra.mrb[0].mxu0 %v353
        %v492 = vpop.f32.mrb[0].mxu0
        %v493 = vadd.f32 %v342, %v492
        %v494 = vpop.f32.mrb[0].mxu0
        %v495 = vadd.f32 %v346, %v494
        %496 = vdwg.mxu0
        %497 = vmatprep.subr.mxu0 0.0
        %498 = vmatpush1.msra.mxu0 %v297
        %499 = vmatprep.subr.mxu0 0.0
        %500 = vmatpush1.msra.mxu0 %v298
        %501 = vmatprep.subr.mxu0 0.0
        %502 = vmatpush1.msra.mxu0 %v299
        %503 = vmatprep.subr.mxu0 0.0
        %504 = vmatpush1.msra.mxu0 %v300
        %505 = vmatprep.subr.mxu0 0.0
        %506 = vmatpush1.msra.mxu0 %v301
        %507 = vmatprep.subr.mxu0 0.0
        %508 = vmatpush1.msra.mxu0 %v302
        %509 = vmatprep.subr.mxu0 0.0
        %510 = vmatpush1.msra.mxu0 %v303
        %511 = vmatprep.subr.mxu0 0.0
        %512 = vmatpush1.msra.mxu0 %v304
        %513 = vmatprep.subr.mxu0 0.0
        %514 = vmatpush1.msra.mxu0 %v305
        %515 = vmatprep.subr.mxu0 0.0
        %516 = vmatpush1.msra.mxu0 %v306
        %517 = vmatprep.subr.mxu0 0.0
        %518 = vmatpush1.msra.mxu0 %v307
        %519 = vmatprep.subr.mxu0 0.0
        %520 = vmatpush1.msra.mxu0 %v308
        %521 = vmatprep.subr.mxu0 0.0
        %522 = vmatpush1.msra.mxu0 %v309
        %523 = vmatprep.subr.mxu0 0.0
        %524 = vmatpush1.msra.mxu0 %v310
        %525 = vmatprep.subr.mxu0 0.0
        %526 = vmatpush1.msra.mxu0 %v311
        %527 = vmatprep.subr.mxu0 0.0
        %528 = vmatpush1.msra.mxu0 %v312
        %529 = vmatprep.subr.mxu0 0.0
        %530 = vmatpush1.msra.mxu0 0.0
        %531 = vmatprep.subr.mxu0 0.0
        %532 = vmatpush1.msra.mxu0 0.0
        %533 = vmatprep.subr.mxu0 0.0
        %534 = vmatpush1.msra.mxu0 0.0
        %535 = vmatprep.subr.mxu0 0.0
        %536 = vmatpush1.msra.mxu0 0.0
        %537 = vmatprep.subr.mxu0 0.0
        %538 = vmatpush1.msra.mxu0 0.0
        %539 = vmatprep.subr.mxu0 0.0
        %540 = vmatpush1.msra.mxu0 0.0
        %541 = vmatprep.subr.mxu0 0.0
        %542 = vmatpush1.msra.mxu0 0.0
        %543 = vmatprep.subr.mxu0 0.0
        %544 = vmatpush1.msra.mxu0 0.0
        %545 = vmatprep.subr.mxu0 0.0
        %546 = vmatpush1.msra.mxu0 0.0
        %547 = vmatprep.subr.mxu0 0.0
        %548 = vmatpush1.msra.mxu0 0.0
        %549 = vmatprep.subr.mxu0 0.0
        %550 = vmatpush1.msra.mxu0 0.0
        %551 = vmatprep.subr.mxu0 0.0
        %552 = vmatpush1.msra.mxu0 0.0
        %553 = vmatprep.subr.mxu0 0.0
        %554 = vmatpush1.msra.mxu0 0.0
        %555 = vmatprep.subr.mxu0 0.0
        %556 = vmatpush1.msra.mxu0 0.0
        %557 = vmatprep.subr.mxu0 0.0
        %558 = vmatpush1.msra.mxu0 0.0
        %559 = vmatprep.subr.mxu0 0.0
        %560 = vmatpush1.msra.mxu0 0.0
        %561 = vmatprep.mubr.f32.mxu0 0.0
        %562 = vmatmul.mubr.f32.gmra.mrb[0].mxu0 %v422
        %v563 = vpop.f32.mrb[0].mxu0
        %v564 = vadd.f32 0.0, %v563
        %v565 = vpop.f32.mrb[0].mxu0
        %566 = vdwg.mxu0
        %567 = vst [vmem:[%s295] sm:$0xff] %v564
        %568 = vmatprep.subr.mxu0 0.0
        %569 = vmatpush1.msra.mxu0 %v297
        %570 = vmatprep.subr.mxu0 0.0
        %571 = vmatpush1.msra.mxu0 %v298
        %572 = vmatprep.subr.mxu0 0.0
        %573 = vmatpush1.msra.mxu0 %v299
        %574 = vmatprep.subr.mxu0 0.0
        %575 = vmatpush1.msra.mxu0 %v300
        %576 = vmatprep.subr.mxu0 0.0
        %577 = vmatpush1.msra.mxu0 %v301
        %578 = vmatprep.subr.mxu0 0.0
        %579 = vmatpush1.msra.mxu0 %v302
        %580 = vmatprep.subr.mxu0 0.0
        %581 = vmatpush1.msra.mxu0 %v303
        %582 = vmatprep.subr.mxu0 0.0
        %583 = vmatpush1.msra.mxu0 %v304
        %584 = vmatprep.subr.mxu0 0.0
        %585 = vmatpush1.msra.mxu0 %v305
        %586 = vmatprep.subr.mxu0 0.0
        %587 = vmatpush1.msra.mxu0 %v306
        %588 = vmatprep.subr.mxu0 0.0
        %589 = vmatpush1.msra.mxu0 %v307
        %590 = vmatprep.subr.mxu0 0.0
        %591 = vmatpush1.msra.mxu0 %v308
        %592 = vmatprep.subr.mxu0 0.0
        %593 = vmatpush1.msra.mxu0 %v309
        %594 = vmatprep.subr.mxu0 0.0
        %595 = vmatpush1.msra.mxu0 %v310
        %596 = vmatprep.subr.mxu0 0.0
        %597 = vmatpush1.msra.mxu0 %v311
        %598 = vmatprep.subr.mxu0 0.0
        %599 = vmatpush1.msra.mxu0 %v312
        %600 = vmatprep.subr.mxu0 0.0
        %601 = vmatpush1.msra.mxu0 0.0
        %602 = vmatprep.subr.mxu0 0.0
        %603 = vmatpush1.msra.mxu0 0.0
        %604 = vmatprep.subr.mxu0 0.0
        %605 = vmatpush1.msra.mxu0 0.0
        %606 = vmatprep.subr.mxu0 0.0
        %607 = vmatpush1.msra.mxu0 0.0
        %608 = vmatprep.subr.mxu0 0.0
        %609 = vmatpush1.msra.mxu0 0.0
        %610 = vmatprep.subr.mxu0 0.0
        %611 = vmatpush1.msra.mxu0 0.0
        %612 = vmatprep.subr.mxu0 0.0
        %613 = vmatpush1.msra.mxu0 0.0
        %614 = vmatprep.subr.mxu0 0.0
        %615 = vmatpush1.msra.mxu0 0.0
        %616 = vmatprep.subr.mxu0 0.0
        %617 = vmatpush1.msra.mxu0 0.0
        %618 = vmatprep.subr.mxu0 0.0
        %619 = vmatpush1.msra.mxu0 0.0
        %620 = vmatprep.subr.mxu0 0.0
        %621 = vmatpush1.msra.mxu0 0.0
        %622 = vmatprep.subr.mxu0 0.0
        %623 = vmatpush1.msra.mxu0 0.0
        %624 = vmatprep.subr.mxu0 0.0
        %625 = vmatpush1.msra.mxu0 0.0
        %626 = vmatprep.subr.mxu0 0.0
        %627 = vmatpush1.msra.mxu0 0.0
        %628 = vmatprep.subr.mxu0 0.0
        %629 = vmatpush1.msra.mxu0 0.0
        %630 = vmatprep.subr.mxu0 0.0
        %631 = vmatpush1.msra.mxu0 0.0
        %632 = vmatprep.mubr.f32.mxu0 0.0
        %633 = vmatmul.mubr.f32.gmra.mrb[0].mxu0 %v424
        %v634 = vpop.f32.mrb[0].mxu0
        %v635 = vadd.f32 0.0, %v634
        %v636 = vpop.f32.mrb[0].mxu0
        %637 = vdwg.mxu0
        %s638 = scalar_lea.vmem %s295, 8 [#allocation8]
        %639 = vst [vmem:[%s638] sm:$0xff] %v635
        %640 = vmatprep.subr.mxu0 0.0
        %641 = vmatpush1.msra.mxu0 %v297
        %642 = vmatprep.subr.mxu0 0.0
        %643 = vmatpush1.msra.mxu0 %v298
        %644 = vmatprep.subr.mxu0 0.0
        %645 = vmatpush1.msra.mxu0 %v299
        %646 = vmatprep.subr.mxu0 0.0
        %647 = vmatpush1.msra.mxu0 %v300
        %648 = vmatprep.subr.mxu0 0.0
        %649 = vmatpush1.msra.mxu0 %v301
        %650 = vmatprep.subr.mxu0 0.0
        %651 = vmatpush1.msra.mxu0 %v302
        %652 = vmatprep.subr.mxu0 0.0
        %653 = vmatpush1.msra.mxu0 %v303
        %654 = vmatprep.subr.mxu0 0.0
        %655 = vmatpush1.msra.mxu0 %v304
        %656 = vmatprep.subr.mxu0 0.0
        %657 = vmatpush1.msra.mxu0 %v305
        %658 = vmatprep.subr.mxu0 0.0
        %659 = vmatpush1.msra.mxu0 %v306
        %660 = vmatprep.subr.mxu0 0.0
        %661 = vmatpush1.msra.mxu0 %v307
        %662 = vmatprep.subr.mxu0 0.0
        %663 = vmatpush1.msra.mxu0 %v308
        %664 = vmatprep.subr.mxu0 0.0
        %665 = vmatpush1.msra.mxu0 %v309
        %666 = vmatprep.subr.mxu0 0.0
        %667 = vmatpush1.msra.mxu0 %v310
        %668 = vmatprep.subr.mxu0 0.0
        %669 = vmatpush1.msra.mxu0 %v311
        %670 = vmatprep.subr.mxu0 0.0
        %671 = vmatpush1.msra.mxu0 %v312
        %672 = vmatprep.subr.mxu0 0.0
        %673 = vmatpush1.msra.mxu0 0.0
        %674 = vmatprep.subr.mxu0 0.0
        %675 = vmatpush1.msra.mxu0 0.0
        %676 = vmatprep.subr.mxu0 0.0
        %677 = vmatpush1.msra.mxu0 0.0
        %678 = vmatprep.subr.mxu0 0.0
        %679 = vmatpush1.msra.mxu0 0.0
        %680 = vmatprep.subr.mxu0 0.0
        %681 = vmatpush1.msra.mxu0 0.0
        %682 = vmatprep.subr.mxu0 0.0
        %683 = vmatpush1.msra.mxu0 0.0
        %684 = vmatprep.subr.mxu0 0.0
        %685 = vmatpush1.msra.mxu0 0.0
        %686 = vmatprep.subr.mxu0 0.0
        %687 = vmatpush1.msra.mxu0 0.0
        %688 = vmatprep.subr.mxu0 0.0
        %689 = vmatpush1.msra.mxu0 0.0
        %690 = vmatprep.subr.mxu0 0.0
        %691 = vmatpush1.msra.mxu0 0.0
        %692 = vmatprep.subr.mxu0 0.0
        %693 = vmatpush1.msra.mxu0 0.0
        %694 = vmatprep.subr.mxu0 0.0
        %695 = vmatpush1.msra.mxu0 0.0
        %696 = vmatprep.subr.mxu0 0.0
        %697 = vmatpush1.msra.mxu0 0.0
        %698 = vmatprep.subr.mxu0 0.0
        %699 = vmatpush1.msra.mxu0 0.0
        %700 = vmatprep.subr.mxu0 0.0
        %701 = vmatpush1.msra.mxu0 0.0
        %702 = vmatprep.subr.mxu0 0.0
        %703 = vmatpush1.msra.mxu0 0.0
        %704 = vmatprep.mubr.f32.mxu0 0.0
        %705 = vmatmul.mubr.f32.gmra.mrb[0].mxu0 %v493
        %v706 = vpop.f32.mrb[0].mxu0
        %v707 = vadd.f32 0.0, %v706
        %v708 = vpop.f32.mrb[0].mxu0
        %709 = vdwg.mxu0
        %s710 = scalar_lea.vmem %s295, 16 [#allocation8]
        %711 = vst [vmem:[%s710] sm:$0xff] %v707
        %712 = vmatprep.subr.mxu0 0.0
        %713 = vmatpush1.msra.mxu0 %v297
        %714 = vmatprep.subr.mxu0 0.0
        %715 = vmatpush1.msra.mxu0 %v298
        %716 = vmatprep.subr.mxu0 0.0
        %717 = vmatpush1.msra.mxu0 %v299
        %718 = vmatprep.subr.mxu0 0.0
        %719 = vmatpush1.msra.mxu0 %v300
        %720 = vmatprep.subr.mxu0 0.0
        %721 = vmatpush1.msra.mxu0 %v301
        %722 = vmatprep.subr.mxu0 0.0
        %723 = vmatpush1.msra.mxu0 %v302
        %724 = vmatprep.subr.mxu0 0.0
        %725 = vmatpush1.msra.mxu0 %v303
        %726 = vmatprep.subr.mxu0 0.0
        %727 = vmatpush1.msra.mxu0 %v304
        %728 = vmatprep.subr.mxu0 0.0
        %729 = vmatpush1.msra.mxu0 %v305
        %730 = vmatprep.subr.mxu0 0.0
        %731 = vmatpush1.msra.mxu0 %v306
        %732 = vmatprep.subr.mxu0 0.0
        %733 = vmatpush1.msra.mxu0 %v307
        %734 = vmatprep.subr.mxu0 0.0
        %735 = vmatpush1.msra.mxu0 %v308
        %736 = vmatprep.subr.mxu0 0.0
        %737 = vmatpush1.msra.mxu0 %v309
        %738 = vmatprep.subr.mxu0 0.0
        %739 = vmatpush1.msra.mxu0 %v310
        %740 = vmatprep.subr.mxu0 0.0
        %741 = vmatpush1.msra.mxu0 %v311
        %742 = vmatprep.subr.mxu0 0.0
        %743 = vmatpush1.msra.mxu0 %v312
        %744 = vmatprep.subr.mxu0 0.0
        %745 = vmatpush1.msra.mxu0 0.0
        %746 = vmatprep.subr.mxu0 0.0
        %747 = vmatpush1.msra.mxu0 0.0
        %748 = vmatprep.subr.mxu0 0.0
        %749 = vmatpush1.msra.mxu0 0.0
        %750 = vmatprep.subr.mxu0 0.0
        %751 = vmatpush1.msra.mxu0 0.0
        %752 = vmatprep.subr.mxu0 0.0
        %753 = vmatpush1.msra.mxu0 0.0
        %754 = vmatprep.subr.mxu0 0.0
        %755 = vmatpush1.msra.mxu0 0.0
        %756 = vmatprep.subr.mxu0 0.0
        %757 = vmatpush1.msra.mxu0 0.0
        %758 = vmatprep.subr.mxu0 0.0
        %759 = vmatpush1.msra.mxu0 0.0
        %760 = vmatprep.subr.mxu0 0.0
        %761 = vmatpush1.msra.mxu0 0.0
        %762 = vmatprep.subr.mxu0 0.0
        %763 = vmatpush1.msra.mxu0 0.0
        %764 = vmatprep.subr.mxu0 0.0
        %765 = vmatpush1.msra.mxu0 0.0
        %766 = vmatprep.subr.mxu0 0.0
        %767 = vmatpush1.msra.mxu0 0.0
        %768 = vmatprep.subr.mxu0 0.0
        %769 = vmatpush1.msra.mxu0 0.0
        %770 = vmatprep.subr.mxu0 0.0
        %771 = vmatpush1.msra.mxu0 0.0
        %772 = vmatprep.subr.mxu0 0.0
        %773 = vmatpush1.msra.mxu0 0.0
        %774 = vmatprep.subr.mxu0 0.0
        %775 = vmatpush1.msra.mxu0 0.0
        %776 = vmatprep.mubr.f32.mxu0 0.0
        %777 = vmatmul.mubr.f32.gmra.mrb[0].mxu0 %v495
        %v778 = vpop.f32.mrb[0].mxu0
        %v779 = vadd.f32 0.0, %v778
        %v780 = vpop.f32.mrb[0].mxu0
        %781 = vdwg.mxu0
        %s782 = scalar_lea.vmem %s295, 24 [#allocation8]
        %783 = vst [vmem:[%s782] sm:$0xff] %v779
        %s784 = sand.u32 %s153, 1
        %s785 = scalar_lea.sflag [#allocation4], %s784
        %s786 = sand.u32 %s153, 1
        %s787 = smul.addr %s786, 32
        %s788 = scalar_lea.vmem [#allocation8], %s787
        // Predicated region
        $region49: #{tpu_custom_call.1} parent=35 // pred_check
          %p789 = pneg %p163
        $region50: #{tpu_custom_call.1} parent=35 // pred_check_branch
          %791 = sbr.rel (%p789) target = $region52
        $region51: #{tpu_custom_call.1} parent=35 // pred_region
          %s793 = ssub.s32 512, 512
          %794 = vsyncadd %s785, %s793
          %s795 = sadd.s32 %s30, %s31
          %s796 = smul.addr %s29, 4
          %s797 = sadd.s32 %s795, %s796
          %s798 = smul.addr %s797, 128
          %s799 = scalar_lea.hbm %s4, %s798
          %s800 = sshll.u32 %s788, 4
          %s801 = int_to_ptr.vmem [resolvable:$true] %s800
          %806 = dma.vmem_to_hbm [thread:$0]  %s801, 512, %s799, %s785, 128, 128, 8
        $region52: #{tpu_custom_call.1} parent=35 // pred_fallthru
          _
      $region36: #{tpu_custom_call.1} parent=5 // pred_fallthru
        _
      %p807 = scmp.le.s32.totalorder 2, %s19
      // Predicated region
      $region53: #{tpu_custom_call.1} parent=5 // pred_check
        %p808 = pneg %p807
      $region54: #{tpu_custom_call.1} parent=5 // pred_check_branch
        %810 = sbr.rel (%p808) target = $region56
      $region55: #{tpu_custom_call.1} parent=5 // pred_region
        %s811 = ssub.s32 %s19, 2
        // Predicated region
        $region57: #{tpu_custom_call.1} parent=55 // pred_check
          %p812 = pneg %p169
        $region58: #{tpu_custom_call.1} parent=55 // pred_check_branch
          %814 = sbr.rel (%p812) target = $region60
        $region59: #{tpu_custom_call.1} parent=55 // pred_region
          %s815 = sand.u32 %s154, 1
          %s816 = scalar_lea.sflag [#allocation4], %s815
          %s817 = sand.u32 %s154, 1
          %s818 = smul.addr %s817, 32
          %s819 = scalar_lea.vmem [#allocation8], %s818
          %820 = dma.done %s816, 512
        $region60: #{tpu_custom_call.1} parent=55 // pred_fallthru
          _
      $region56: #{tpu_custom_call.1} parent=5 // pred_fallthru
        _
    $region6: #{tpu_custom_call.1} parent=1 // loop_footer
      %s23 = sadd.s32 1, %s19
    $region7: #{tpu_custom_call.1} parent=1 // loop_footer_branch
      %18 = sbr.rel target = $region3
    $region8: #{tpu_custom_call.1} parent=1 // loop_exit
      _
    %821 = vsyncpa [#allocation3], 1
    %s822 = scalar_lea.sflag [#allocation3], 1
    %823 = vsyncpa %s822, 1
    %824 = vsyncpa [#allocation6], 1
    %s825 = scalar_lea.sflag [#allocation6], 1
    %826 = vsyncpa %s825, 1
    %827 = vsyncpa [#allocation4], 1
    %s828 = scalar_lea.sflag [#allocation4], 1
    %829 = vsyncpa %s828, 1

</llo_original>
